<compile_context>
chip_gen: v6e
topology: v6e:2x2x1
jax: 0.10.0
libtpu: 0.0.40
codegen_flags: <defaults>
</compile_context>

<pallas_src>
import math
from typing import NamedTuple

import jax
import jax.numpy as jnp
from jax.experimental import pallas as pl
from jax.experimental.pallas import tpu as pltpu


def _round_up(x, m):
    return ((x + m - 1) // m) * m


_VMEM_BUDGET = 40 * 1024 * 1024   # tile working-set budget (fits v7x 64 MiB VMEM)
_VMEM_LIMIT = 48 * 1024 * 1024    # explicit scoped-VMEM limit (v5e default is 16 MiB)


# --------------------------------------------------------------------------- #
# Kernel
# --------------------------------------------------------------------------- #
def _glu_kernel(x_ref, w_ref, b_ref, o_ref, acc_ref):
    """Grid (M, N, K), K last (reduction -> accumulator stays resident).

    w_ref tile lanes are [linear TN | gate TN]; one MXU matmul per K step.
    The single f32 accumulator is initialized with the broadcast biases at
    k == 0, so the epilogue is just sigmoid * linear + cast-on-store.
    """
    k = pl.program_id(2)
    nk = pl.num_programs(2)

    @pl.when(k == 0)
    def _init():
        # Bias-initialized accumulator: drops the bias adds from the epilogue.
        acc_ref[...] = jnp.broadcast_to(b_ref[...], acc_ref.shape)

    acc_ref[...] += jnp.dot(x_ref[...], w_ref[...],
                            preferred_element_type=jnp.float32)

    @pl.when(k == nk - 1)
    def _epilogue():
        tn = o_ref.shape[-1]
        acc = acc_ref[...]
        lin = acc[:, :tn]                    # lane-aligned static slices (tn % 128 == 0)
        gate = jax.nn.sigmoid(acc[:, tn:])   # f32 epilogue (v5e has no bf16 VPU/EUP)
        o_ref[...] = (lin * gate).astype(o_ref.dtype)


# --------------------------------------------------------------------------- #
# Tile selection
# --------------------------------------------------------------------------- #
class GLUTiles(NamedTuple):
    tm: int
    tn: int
    tk: int
    m_pad: int
    n_pad: int
    k_pad: int


def glu_tiles(batch, d_in, d_out, *, in_itemsize, out_itemsize,
              block_m=512, block_n=512, block_k=4096,
              vmem_budget=_VMEM_BUDGET):
    """Pick (TM, TN, TK) and padded array sizes.

    Policy:
      * TK as large as possible (ideally all of padded D_in) so the accumulator
        never round-trips VMEM between K steps and init/epilogue run once.
      * TM = padded batch when it fits -> weights stream from HBM exactly once.
      * If the (M, N) grid would collapse to a single block, split N (or M) so
        a v7x megacore gets >= 2 parallel blocks.
      * Shrink (TK first) until the double-buffered working set fits the budget.
    """
    m_full = _round_up(batch, 8)
    n_full = _round_up(d_out, 128)
    k_full = _round_up(d_in, 128)

    tm = min(_round_up(block_m, 8), m_full)
    tn = min(_round_up(block_n, 128), n_full)
    tk = min(_round_up(block_k, 128), k_full)

    # Megacore: guarantee >= 2 blocks on a "parallel" axis when possible.
    if tm == m_full and tn == n_full:
        n_blocks = n_full // 128
        m_blocks = m_full // 8
        if n_blocks >= 2:
            d = max(d for d in range(1, n_blocks) if n_blocks % d == 0)
            tn = 128 * d
        elif m_blocks >= 2:
            d = max(d for d in range(1, m_blocks) if m_blocks % d == 0)
            tm = 8 * d

    def working_set(tm_, tn_, tk_):
        x_t = tm_ * tk_ * in_itemsize
        w_t = tk_ * 2 * tn_ * in_itemsize
        b_t = 2 * tn_ * 4
        o_t = tm_ * tn_ * out_itemsize
        acc = tm_ * 2 * tn_ * 4
        return 2 * (x_t + w_t + b_t + o_t) + acc   # in/out tiles double-buffered

    while working_set(tm, tn, tk) > vmem_budget:
        if tk > 512:
            tk = max(512, _round_up(tk // 2, 128))
        elif tm > 256:
            tm = max(256, _round_up(tm // 2, 8))
        elif tn > 256:
            tn = max(256, _round_up(tn // 2, 128))
        elif tk > 128:
            tk = max(128, _round_up(tk // 2, 128))
        elif tm > 8:
            tm = max(8, _round_up(tm // 2, 8))
        elif tn > 128:
            tn = max(128, _round_up(tn // 2, 128))
        else:
            break

    return GLUTiles(tm=tm, tn=tn, tk=tk,
                    m_pad=_round_up(batch, tm),
                    n_pad=_round_up(d_out, tn),
                    k_pad=_round_up(d_in, tk))


# --------------------------------------------------------------------------- #
# Parameter fusion (hoist this out of the hot path)
# --------------------------------------------------------------------------- #
def fuse_glu_params(w_lin, b_lin, w_gate, b_gate, tiles, *, compute_dtype=None):
    """Fuse + pad the two projections ONCE.

    Returns
      w_fused: (k_pad, num_j * 2 * TN) -- per N-tile the lanes are
               [linear TN | gate TN], so each grid step DMAs one contiguous
               lane-dense weight tile and issues one MXU matmul.
      b_fused: (1, num_j * 2 * TN) float32, same interleaving.
    """
    d_in, d_out = w_lin.shape
    t = tiles
    num_j = t.n_pad // t.tn
    wdt = jnp.dtype(compute_dtype) if compute_dtype is not None else jnp.dtype(w_lin.dtype)

    def prep_w(w):
        w = jnp.asarray(w, wdt)
        w = jnp.pad(w, ((0, t.k_pad - d_in), (0, t.n_pad - d_out)))
        return w.reshape(t.k_pad, num_j, t.tn)

    def prep_b(b):
        b = jnp.asarray(b, jnp.float32).reshape(1, d_out)
        b = jnp.pad(b, ((0, 0), (0, t.n_pad - d_out)))
        return b.reshape(1, num_j, t.tn)

    w_fused = jnp.concatenate([prep_w(w_lin), prep_w(w_gate)], axis=2)
    w_fused = w_fused.reshape(t.k_pad, num_j * 2 * t.tn)
    b_fused = jnp.concatenate([prep_b(b_lin), prep_b(b_gate)], axis=2)
    b_fused = b_fused.reshape(1, num_j * 2 * t.tn)
    return w_fused, b_fused


# --------------------------------------------------------------------------- #
# Forward (hot path: consumes pre-fused params)
# --------------------------------------------------------------------------- #
def glu_forward_fused(x, w_fused, b_fused, d_out, tiles, *,
                      compute_dtype=None, weight_buffers=2, interpret=False):
    lead = x.shape[:-1]
    d_in = x.shape[-1]
    x2 = x.reshape(-1, d_in)
    batch = x2.shape[0]
    out_dtype = x.dtype
    t = tiles

    if compute_dtype is not None:
        x2 = x2.astype(compute_dtype)
    # Zero padding: extra K columns contribute nothing to the matmul; extra
    # M rows / N cols are sliced off below.
    xp = jnp.pad(x2, ((0, t.m_pad - batch), (0, t.k_pad - d_in)))

    grid = (t.m_pad // t.tm, t.n_pad // t.tn, t.k_pad // t.tk)

    if weight_buffers > 2:
        # Deeper weight pipeline; only useful if the weight DMA stream is exposed.
        w_spec = pl.BlockSpec((t.tk, 2 * t.tn), lambda i, j, k: (k, j),
                              pipeline_mode=pl.Buffered(weight_buffers))
    else:
        w_spec = pl.BlockSpec((t.tk, 2 * t.tn), lambda i, j, k: (k, j))

    flops = 4 * batch * d_in * d_out                 # two matmuls
    bytes_accessed = int(
        xp.size * xp.dtype.itemsize
        + w_fused.size * w_fused.dtype.itemsize
        + b_fused.size * b_fused.dtype.itemsize
        + t.m_pad * t.n_pad * jnp.dtype(out_dtype).itemsize)

    out = pl.pallas_call(
        _glu_kernel,
        out_shape=jax.ShapeDtypeStruct((t.m_pad, t.n_pad), out_dtype),
        grid_spec=pltpu.PrefetchScalarGridSpec(
            num_scalar_prefetch=0,
            grid=grid,
            in_specs=[
                pl.BlockSpec((t.tm, t.tk), lambda i, j, k: (i, k)),    # x tile
                w_spec,                                                # fused weights
                pl.BlockSpec((1, 2 * t.tn), lambda i, j, k: (0, j)),   # fused biases
            ],
            out_specs=pl.BlockSpec((t.tm, t.tn), lambda i, j, k: (i, j)),
            scratch_shapes=[pltpu.VMEM((t.tm, 2 * t.tn), jnp.float32)],
        ),
        compiler_params=pltpu.CompilerParams(
            dimension_semantics=("parallel", "parallel", "arbitrary"),
            vmem_limit_bytes=_VMEM_LIMIT,
        ),
        cost_estimate=pl.CostEstimate(
            flops=flops,
            transcendentals=batch * d_out,           # sigmoid
            bytes_accessed=bytes_accessed,
        ),
        interpret=interpret,
    )(xp, w_fused, b_fused)

    return out[:batch, :d_out].reshape(*lead, d_out)


def gated_linear_unit(x, w_lin, b_lin, w_gate, b_gate, *,
                      block_m=512, block_n=512, block_k=4096,
                      compute_dtype=None, weight_buffers=2, interpret=False):
    """GLU forward: (x @ W_lin + b_lin) * sigmoid(x @ W_gate + b_gate).

    Convenience entry point (fuses/pads the weights per call). For repeated
    calls, hoist glu_tiles() + fuse_glu_params() and call glu_forward_fused().
    On v6e/v7x prefer compute_dtype=jnp.bfloat16 (f32 accumulation kept).
    """
    d_in = x.shape[-1]
    d_out = w_lin.shape[1]
    batch = 1
    for s in x.shape[:-1]:
        batch *= s
    cdt = jnp.dtype(compute_dtype) if compute_dtype is not None else jnp.dtype(x.dtype)
    tiles = glu_tiles(batch, d_in, d_out,
                      in_itemsize=cdt.itemsize,
                      out_itemsize=jnp.dtype(x.dtype).itemsize,
                      block_m=block_m, block_n=block_n, block_k=block_k)
    w_fused, b_fused = fuse_glu_params(w_lin, b_lin, w_gate, b_gate, tiles,
                                       compute_dtype=compute_dtype)
    return glu_forward_fused(x, w_fused, b_fused, d_out, tiles,
                             compute_dtype=compute_dtype,
                             weight_buffers=weight_buffers, interpret=interpret)


# --- deterministic init mirroring the PyTorch module's initialize_weights() ---
def _xavier_uniform(key, fan_in, fan_out, gain):
    bound = gain * math.sqrt(6.0 / (fan_in + fan_out))
    return jax.random.uniform(key, (fan_in, fan_out), jnp.float32, -bound, bound)


def _linear_bias(key, fan_in, fan_out):
    bound = 1.0 / math.sqrt(fan_in)
    return jax.random.uniform(key, (1, fan_out), jnp.float32, -bound, bound)


if __name__ == "__main__":
    # TODO(synk): only the module's default gate_activation='Sigmoid' is implemented in-kernel.
    B, D_in, D_out = 24, 160, 200

    key = jax.random.PRNGKey(0)
    kx, kwl, kbl, kwg, kbg = jax.random.split(key, 5)

    x = jax.random.normal(kx, (B, D_in), jnp.float32)
    # linear layer: xavier_uniform, gain = calculate_gain('relu') = sqrt(2)
    # gate layer:   xavier_uniform, gain = calculate_gain('sigmoid') = 1.0
    w_lin = _xavier_uniform(kwl, D_in, D_out, gain=math.sqrt(2.0))
    b_lin = _linear_bias(kbl, D_in, D_out)
    w_gate = _xavier_uniform(kwg, D_in, D_out, gain=1.0)
    b_gate = _linear_bias(kbg, D_in, D_out)

    ref = (x @ w_lin + b_lin) * jax.nn.sigmoid(x @ w_gate + b_gate)

    # 1) Default (large-tile) config: fused single-matmul kernel, megacore-split N.
    out = jax.block_until_ready(gated_linear_unit(x, w_lin, b_lin, w_gate, b_gate))
    assert out.shape == (B, D_out)
    assert jnp.allclose(out, ref, atol=1e-5, rtol=1e-5), "mismatch (default tiles)"

    # 2) Small tiles forcing a real (2, 2, 2) grid with K accumulation.
    out_t = jax.block_until_ready(
        gated_linear_unit(x, w_lin, b_lin, w_gate, b_gate,
                          block_m=16, block_n=128, block_k=128))
    assert jnp.allclose(out_t, ref, atol=1e-5, rtol=1e-5), "mismatch (tiled grid)"

    # 3) Hoisted hot path: tiles + fused/padded weights prepared once, reused.
    tiles = glu_tiles(B, D_in, D_out, in_itemsize=4, out_itemsize=4)
    w_f, b_f = fuse_glu_params(w_lin, b_lin, w_gate, b_gate, tiles)
    out_h = jax.block_until_ready(glu_forward_fused(x, w_f, b_f, D_out, tiles))
    assert jnp.allclose(out_h, ref, atol=1e-5, rtol=1e-5), "mismatch (hoisted params)"

    # 4) bf16 MXU path (recommended on v6e/v7x): f32 accumulation and epilogue.
    out_bf = jax.block_until_ready(
        gated_linear_unit(x, w_lin, b_lin, w_gate, b_gate,
                          compute_dtype=jnp.bfloat16))
    assert out_bf.dtype == x.dtype
    assert jnp.allclose(out_bf, ref, atol=8e-2, rtol=8e-2), "mismatch (bf16 compute)"

    print("KERNEL_OK")
</pallas_src>

<mosaic_0001>
module attributes {stable_mosaic.version = 11 : i64} {
  func.func @_glu_kernel(%arg0: i32, %arg1: i32, %arg2: i32, %arg3: memref<24x256xf32, #tpu.memory_space<vmem>>, %arg4: memref<256x256xf32, #tpu.memory_space<vmem>>, %arg5: memref<1x256xf32, #tpu.memory_space<vmem>>, %arg6: memref<24x128xf32, #tpu.memory_space<vmem>>, %arg7: memref<24x256xf32, #tpu.memory_space<vmem>>) attributes {dimension_semantics = [#tpu.dimension_semantics<parallel>, #tpu.dimension_semantics<parallel>, #tpu.dimension_semantics<arbitrary>], iteration_bounds = array<i64: 1, 2, 1>, scalar_prefetch = 0 : i64, scratch_operands = 1 : i64, tpu.core_type = #tpu.core_type<tc>, window_params = [{transform_indices = @transform_0, window_bounds = array<i64: 24, 256>}, {transform_indices = @transform_1, window_bounds = array<i64: 256, 256>}, {transform_indices = @transform_2, window_bounds = array<i64: 1, 256>}, {transform_indices = @transform_3, window_bounds = array<i64: 24, 128>}]} {
    %c0_i32 = arith.constant 0 : i32
    %0 = arith.cmpi eq, %arg2, %c0_i32 : i32
    %1 = arith.extui %0 : i1 to i32
    %c0_i32_0 = arith.constant 0 : i32
    %2 = arith.cmpi ne, %1, %c0_i32_0 : i32
    scf.if %2 {
      %c0_10 = arith.constant 0 : index
      %c0_11 = arith.constant 0 : index
      %12 = vector.load %arg5[%c0_10, %c0_11] : memref<1x256xf32, #tpu.memory_space<vmem>>, vector<1x256xf32>
      %13 = vector.shape_cast %12 : vector<1x256xf32> to vector<1x256xf32>
      %14 = vector.broadcast %13 : vector<1x256xf32> to vector<24x256xf32>
      %c0_12 = arith.constant 0 : index
      %c0_13 = arith.constant 0 : index
      %15 = vector.load %arg7[%c0_12, %c0_13] : memref<24x256xf32, #tpu.memory_space<vmem>>, vector<24x256xf32>
      tpu.vector_store %arg7[%c0_12, %c0_13], %14 {strides = array<i32>} : memref<24x256xf32, #tpu.memory_space<vmem>>, vector<24x256xf32>,
    } else {
    }
    %c0 = arith.constant 0 : index
    %c0_1 = arith.constant 0 : index
    %3 = vector.load %arg7[%c0, %c0_1] : memref<24x256xf32, #tpu.memory_space<vmem>>, vector<24x256xf32>
    %c0_2 = arith.constant 0 : index
    %c0_3 = arith.constant 0 : index
    %4 = vector.load %arg3[%c0_2, %c0_3] : memref<24x256xf32, #tpu.memory_space<vmem>>, vector<24x256xf32>
    %c0_4 = arith.constant 0 : index
    %c0_5 = arith.constant 0 : index
    %5 = vector.load %arg4[%c0_4, %c0_5] : memref<256x256xf32, #tpu.memory_space<vmem>>, vector<256x256xf32>
    %cst = arith.constant dense<0.000000e+00> : vector<24x256xf32>
    %6 = tpu.matmul %4, %5, %cst {dimension_numbers = #tpu.dot_dimension_numbers<[1], [0], [0], [1], [0, 0, 1, 1], [], []>} : vector<24x256xf32>, vector<256x256xf32>, vector<24x256xf32> -> vector<24x256xf32>
    %7 = arith.addf %3, %6 : vector<24x256xf32>
    %c0_6 = arith.constant 0 : index
    %c0_7 = arith.constant 0 : index
    %8 = vector.load %arg7[%c0_6, %c0_7] : memref<24x256xf32, #tpu.memory_space<vmem>>, vector<24x256xf32>
    tpu.vector_store %arg7[%c0_6, %c0_7], %7 {strides = array<i32>} : memref<24x256xf32, #tpu.memory_space<vmem>>, vector<24x256xf32>,
    %c0_i32_8 = arith.constant 0 : i32
    %9 = arith.cmpi eq, %arg2, %c0_i32_8 : i32
    %10 = arith.extui %9 : i1 to i32
    %c0_i32_9 = arith.constant 0 : i32
    %11 = arith.cmpi ne, %10, %c0_i32_9 : i32
    scf.if %11 {
      %c0_10 = arith.constant 0 : index
      %c0_11 = arith.constant 0 : index
      %12 = vector.load %arg7[%c0_10, %c0_11] : memref<24x256xf32, #tpu.memory_space<vmem>>, vector<24x256xf32>
      %13 = vector.extract_strided_slice %12 {offsets = [0, 0], sizes = [24, 128], strides = [1, 1]} : vector<24x256xf32> to vector<24x128xf32>
      %14 = vector.extract_strided_slice %12 {offsets = [0, 128], sizes = [24, 128], strides = [1, 1]} : vector<24x256xf32> to vector<24x128xf32>
      %15 = arith.negf %14 : vector<24x128xf32>
      %16 = math.exp %15 : vector<24x128xf32>
      %cst_12 = arith.constant 1.000000e+00 : f32
      %17 = vector.broadcast %cst_12 : f32 to vector<24x128xf32>
      %18 = arith.addf %17, %16 : vector<24x128xf32>
      %19 = arith.divf %17, %18 : vector<24x128xf32>
      %20 = arith.mulf %13, %19 : vector<24x128xf32>
      %c0_13 = arith.constant 0 : index
      %c0_14 = arith.constant 0 : index
      %21 = vector.load %arg6[%c0_13, %c0_14] : memref<24x128xf32, #tpu.memory_space<vmem>>, vector<24x128xf32>
      tpu.vector_store %arg6[%c0_13, %c0_14], %20 {strides = array<i32>} : memref<24x128xf32, #tpu.memory_space<vmem>>, vector<24x128xf32>,
    } else {
    }
    return
  }
  func.func @transform_0(%arg0: i32, %arg1: i32, %arg2: i32) -> (i32, i32) {
    %c0_i32 = arith.constant 0 : i32
    return %arg0, %arg2 : i32, i32
  }
  func.func @transform_1(%arg0: i32, %arg1: i32, %arg2: i32) -> (i32, i32) {
    %c0_i32 = arith.constant 0 : i32
    return %arg2, %arg1 : i32, i32
  }
  func.func @transform_2(%arg0: i32, %arg1: i32, %arg2: i32) -> (i32, i32) {
    %c0_i32 = arith.constant 0 : i32
    %c0_i32_0 = arith.constant 0 : i32
    return %c0_i32, %arg1 : i32, i32
  }
  func.func @transform_3(%arg0: i32, %arg1: i32, %arg2: i32) -> (i32, i32) {
    %c0_i32 = arith.constant 0 : i32
    return %arg0, %arg1 : i32, i32
  }
}

</mosaic_0001>

<llo_original>
// kernel: tpu_custom_call.1
$region0: #{tpu_custom_call.1}
  #allocation0 [shape = 'u32[]', space=smem, size = 0x4, offset = 0x4, fixed_abs, tag = 'smem constant byte address 0x4 - core index']
  #allocation1 [shape = 'u32[144,128]{1,0:T(1,128)}', space=vmem, size = 0x12000, scoped, tag = 'internal scratch']
  #allocation2 [shape = 'f32[24,256]{1,0:T(8,128)}', space=vmem, size = 0x6000, scoped, tag = 'scratch operand']
  %s0 = inlined_call_operand.hbm [shape: f32[24,256], index: 0, kind: input, shape index: {}]
  %s1 = inlined_call_operand.hbm [shape: f32[256,512], index: 1, kind: input, shape index: {}]
  %s2 = inlined_call_operand.hbm [shape: f32[1,512], index: 2, kind: input, shape index: {}]
  %s3 = inlined_call_operand.hbm [shape: f32[24,256], index: 3, kind: output, shape index: {}]
  %s4 = sld [smem:[#allocation0]]
  $region65: #{tpu_custom_call.1} parent=0
    _
  %s6 = ssub.s32 1, %s4
  %s7 = scalar_select 0, %s6, %s4
  $region1: #{tpu_custom_call.1} parent=0
    #allocation3 [shape = 'u8[24576]{0}', space=vmem, size = 0x6000, scoped, tag = 'input window, operand 0, single buffered']
    #allocation4 [shape = 's32[2]{0}', space=sflag, size = 0x8, scoped, tag = 'scoped memory for tpu_custom_call.1']
    #allocation5 [shape = 's32[2]{0}', space=sflag, size = 0x8, scoped, tag = 'scoped memory for tpu_custom_call.1']
    #allocation6 [shape = 'u8[524288]{0}', space=vmem, size = 0x80000, scoped, tag = 'input window, operand 1']
    #allocation7 [shape = 's32[2]{0}', space=sflag, size = 0x8, scoped, tag = 'scoped memory for tpu_custom_call.1']
    #allocation8 [shape = 'u8[2048]{0}', space=vmem, size = 0x800, scoped, tag = 'input window, operand 2']
    #allocation9 [shape = 'u8[24576]{0}', space=vmem, size = 0x6000, scoped, tag = 'output window, operand 0']
    %8 = vsyncpa [#allocation4], 0
    %9 = vsyncpa [#allocation7], 0
    %s10 = scalar_lea.sflag [#allocation7], 1
    %11 = vsyncpa %s10, 0
    %12 = vsyncpa [#allocation5], 0
    %s13 = scalar_lea.sflag [#allocation5], 1
    %14 = vsyncpa %s13, 0
    loop: start=0, step=1, limit=4
    $region2: #{tpu_custom_call.1} parent=1 // loop_pre_header
      _
    $region3: #{tpu_custom_call.1} parent=1 // loop_header
      %s16 = sphi 0, %s20
      %p17 = scmp.ge.s32.totalorder %s16, 4
      %s23 = sphi 0, %s42
      %s24 = sphi 0, %s38
      %s25 = sphi 0, %s34
      %s26 = sphi 0, %s23
      %s27 = sphi 0, %s24
      %s28 = sphi 0, %s25
      %s29 = sphi 0, %s26
      %s30 = sphi 0, %s27
      %s31 = sphi 0, %s28
      %s47 = sphi 0, %s49
      %s50 = sphi 0, %s47
      %s51 = sphi 0, %s50
      %s67 = sphi 0, %s51
      %s75 = sphi 0, %s77
      %s78 = sphi 0, %s75
      %s79 = sphi 0, %s78
      %s95 = sphi 0, %s79
      %s101 = sphi 0, %s103
      %s104 = sphi 0, %s101
      %s105 = sphi 0, %s104
      %s121 = sphi 0, %s105
      %s129 = sphi 0, %s131
      %s132 = sphi 0, %s129
      %s133 = sphi 0, %s132
      %s149 = sphi 0, %s133
    $region4: #{tpu_custom_call.1} parent=1 // loop_header_branch
      %19 = sbr.rel (%p17) target = $region8
    $region5: #{tpu_custom_call.1} parent=1 // loop_body
      %s21 = ssub.s32 %s16, 1
      %s22 = ssub.s32 %s16, 2
      %s32 = sadd.s32 1, %s25
      %p33 = scmp.ge.s32.totalorder %s32, 1
      %s34 = scalar_select %p33, 0, %s32
      %s35 = sadd.s32 1, %s24
      %s36 = scalar_select %p33, %s35, %s24
      %p37 = scmp.ge.s32.totalorder %s36, 2
      %s38 = scalar_select %p37, 0, %s36
      %s39 = sadd.s32 1, %s23
      %s40 = scalar_select %p37, %s39, %s23
      %p41 = scmp.ge.s32.totalorder %s40, 1
      %s42 = scalar_select %p41, 0, %s40
      %s43 = ssub.s32 %s23, %s42
      %s44 = ssub.s32 %s25, %s34
      %s45 = sor.u32 %s43, %s44
      %p46 = scmp.eq.s32.totalorder %s45, 0
      %s48 = sadd.s32 %s47, 1
      %s49 = scalar_select %p46, %s47, %s48
      %p52 = pneg %p46
      %p53 = scmp.eq.s32.totalorder %s16, 1
      %p54 = por %p52, %p53
      %p55 = scmp.ne.s32.totalorder %s47, %s50
      %p56 = scmp.eq.s32.totalorder %s16, 0
      %p57 = por %p55, %p56
      %p58 = scmp.ne.s32.totalorder %s47, %s50
      %p59 = scmp.eq.s32.totalorder %s21, 1
      %p60 = por %p58, %p59
      %p61 = scmp.ne.s32.totalorder %s50, %s51
      %p62 = scmp.eq.s32.totalorder %s21, 0
      %p63 = por %p61, %p62
      %p64 = scmp.ne.s32.totalorder %s50, %s51
      %p65 = scmp.eq.s32.totalorder %s22, 1
      %p66 = por %p64, %p65
      %p68 = scmp.ne.s32.totalorder %s51, %s67
      %p69 = scmp.eq.s32.totalorder %s22, 0
      %p70 = por %p68, %p69
      %s71 = ssub.s32 %s25, %s34
      %s72 = ssub.s32 %s24, %s38
      %s73 = sor.u32 %s71, %s72
      %p74 = scmp.eq.s32.totalorder %s73, 0
      %s76 = sadd.s32 %s75, 1
      %s77 = scalar_select %p74, %s75, %s76
      %p80 = pneg %p74
      %p81 = scmp.eq.s32.totalorder %s16, 1
      %p82 = por %p80, %p81
      %p83 = scmp.ne.s32.totalorder %s75, %s78
      %p84 = scmp.eq.s32.totalorder %s16, 0
      %p85 = por %p83, %p84
      %p86 = scmp.ne.s32.totalorder %s75, %s78
      %p87 = scmp.eq.s32.totalorder %s21, 1
      %p88 = por %p86, %p87
      %p89 = scmp.ne.s32.totalorder %s78, %s79
      %p90 = scmp.eq.s32.totalorder %s21, 0
      %p91 = por %p89, %p90
      %p92 = scmp.ne.s32.totalorder %s78, %s79
      %p93 = scmp.eq.s32.totalorder %s22, 1
      %p94 = por %p92, %p93
      %p96 = scmp.ne.s32.totalorder %s79, %s95
      %p97 = scmp.eq.s32.totalorder %s22, 0
      %p98 = por %p96, %p97
      %s99 = ssub.s32 %s24, %s38
      %p100 = scmp.eq.s32.totalorder %s99, 0
      %s102 = sadd.s32 %s101, 1
      %s103 = scalar_select %p100, %s101, %s102
      %p106 = pneg %p100
      %p107 = scmp.eq.s32.totalorder %s16, 1
      %p108 = por %p106, %p107
      %p109 = scmp.ne.s32.totalorder %s101, %s104
      %p110 = scmp.eq.s32.totalorder %s16, 0
      %p111 = por %p109, %p110
      %p112 = scmp.ne.s32.totalorder %s101, %s104
      %p113 = scmp.eq.s32.totalorder %s21, 1
      %p114 = por %p112, %p113
      %p115 = scmp.ne.s32.totalorder %s104, %s105
      %p116 = scmp.eq.s32.totalorder %s21, 0
      %p117 = por %p115, %p116
      %p118 = scmp.ne.s32.totalorder %s104, %s105
      %p119 = scmp.eq.s32.totalorder %s22, 1
      %p120 = por %p118, %p119
      %p122 = scmp.ne.s32.totalorder %s105, %s121
      %p123 = scmp.eq.s32.totalorder %s22, 0
      %p124 = por %p122, %p123
      %s125 = ssub.s32 %s23, %s42
      %s126 = ssub.s32 %s24, %s38
      %s127 = sor.u32 %s125, %s126
      %p128 = scmp.eq.s32.totalorder %s127, 0
      %s130 = sadd.s32 %s129, 1
      %s131 = scalar_select %p128, %s129, %s130
      %p134 = pneg %p128
      %p135 = scmp.eq.s32.totalorder %s16, 1
      %p136 = por %p134, %p135
      %p137 = scmp.ne.s32.totalorder %s129, %s132
      %p138 = scmp.eq.s32.totalorder %s16, 0
      %p139 = por %p137, %p138
      %p140 = scmp.ne.s32.totalorder %s129, %s132
      %p141 = scmp.eq.s32.totalorder %s21, 1
      %p142 = por %p140, %p141
      %p143 = scmp.ne.s32.totalorder %s132, %s133
      %p144 = scmp.eq.s32.totalorder %s21, 0
      %p145 = por %p143, %p144
      %p146 = scmp.ne.s32.totalorder %s132, %s133
      %p147 = scmp.eq.s32.totalorder %s22, 1
      %p148 = por %p146, %p147
      %p150 = scmp.ne.s32.totalorder %s133, %s149
      %p151 = scmp.eq.s32.totalorder %s22, 0
      %p152 = por %p150, %p151
      %p153 = scmp.le.s32.totalorder 1, %s16
      %p154 = scmp.lt.s32.totalorder %s16, 3
      %p155 = pnand %p153, %p154
      %p156 = pneg %p155
      // Predicated region
      $region9: #{tpu_custom_call.1} parent=5 // pred_check
        _
      $region10: #{tpu_custom_call.1} parent=5 // pred_check_branch
        %158 = sbr.rel (%p155) target = $region12
      $region11: #{tpu_custom_call.1} parent=5 // pred_region
        %s159 = ssub.s32 %s16, 1
        // Predicated region
        $region13: #{tpu_custom_call.1} parent=11 // pred_check
          %p160 = pneg %p63
        $region14: #{tpu_custom_call.1} parent=11 // pred_check_branch
          %162 = sbr.rel (%p160) target = $region16
        $region15: #{tpu_custom_call.1} parent=11 // pred_region
          %s163 = smul.u32 3, %s26
          %s164 = smul.u32 2, %s28
          %s166 = ssub.s32 768, 768
          %167 = vsyncadd [#allocation4], %s166
          %s168 = smul.addr %s163, 2
          %s169 = sadd.s32 %s164, %s168
          %s170 = smul.addr %s169, 128
          %s171 = scalar_lea.hbm %s0, %s170
          %s172 = sshll.u32 [#allocation3], 4
          %s173 = int_to_ptr.vmem [resolvable:$true] %s172
          %178 = dma.hbm_to_vmem [thread:$0]  %s171, 768, %s173, [#allocation4], 256, 256, 16
        $region16: #{tpu_custom_call.1} parent=11 // pred_fallthru
          _
      $region12: #{tpu_custom_call.1} parent=5 // pred_fallthru
        _
      %p179 = scmp.lt.s32.totalorder %s16, 2
      // Predicated region
      $region17: #{tpu_custom_call.1} parent=5 // pred_check
        %p180 = pneg %p179
      $region18: #{tpu_custom_call.1} parent=5 // pred_check_branch
        %182 = sbr.rel (%p180) target = $region20
      $region19: #{tpu_custom_call.1} parent=5 // pred_region
        // Predicated region
        $region21: #{tpu_custom_call.1} parent=19 // pred_check
          %p183 = pneg %p85
        $region22: #{tpu_custom_call.1} parent=19 // pred_check_branch
          %185 = sbr.rel (%p183) target = $region24
        $region23: #{tpu_custom_call.1} parent=19 // pred_region
          %s186 = sand.u32 %s16, 1
          %s187 = scalar_lea.sflag [#allocation7], %s186
          %s188 = sand.u32 %s75, 1
          %s189 = smul.addr %s188, 512
          %s190 = scalar_lea.vmem [#allocation6], %s189
          %s191 = smul.u32 32, %s25
          %s192 = smul.u32 2, %s24
          %s194 = ssub.s32 8192, 8192
          %195 = vsyncadd %s187, %s194
          %s196 = smul.addr %s191, 4
          %s197 = sadd.s32 %s192, %s196
          %s198 = smul.addr %s197, 128
          %s199 = scalar_lea.hbm %s1, %s198
          %s200 = sshll.u32 %s190, 4
          %s201 = int_to_ptr.vmem [resolvable:$true] %s200
          %206 = dma.hbm_to_vmem [thread:$0]  %s199, 8192, %s201, %s187, 512, 256, 16
        $region24: #{tpu_custom_call.1} parent=19 // pred_fallthru
          _
        // Predicated region
        $region25: #{tpu_custom_call.1} parent=19 // pred_check
          %p207 = pneg %p111
        $region26: #{tpu_custom_call.1} parent=19 // pred_check_branch
          %209 = sbr.rel (%p207) target = $region28
        $region27: #{tpu_custom_call.1} parent=19 // pred_region
          %s210 = sand.u32 %s16, 1
          %s211 = scalar_lea.sflag [#allocation7], %s210
          %s212 = sand.u32 %s101, 1
          %s213 = smul.addr %s212, 2
          %s214 = scalar_lea.vmem [#allocation8], %s213
          %s215 = smul.u32 2, %s24
          %s217 = ssub.s32 32, 32
          %218 = vsyncadd %s211, %s217
          %s219 = smul.addr %s215, 16
          %s220 = scalar_lea.hbm %s2, %s219
          %s222 = sshll.u32 %s214, 4
          %s223 = int_to_ptr.vmem [resolvable:$true] %s222
          %225 = dma.hbm_to_vmem [thread:$0]  %s220, 32, %s223, %s211
        $region28: #{tpu_custom_call.1} parent=19 // pred_fallthru
          _
      $region20: #{tpu_custom_call.1} parent=5 // pred_fallthru
        _
      %p226 = scmp.le.s32.totalorder 1, %s16
      %p227 = scmp.lt.s32.totalorder %s16, 3
      %p228 = pnand %p226, %p227
      %p229 = pneg %p228
      // Predicated region
      $region29: #{tpu_custom_call.1} parent=5 // pred_check
        _
      $region30: #{tpu_custom_call.1} parent=5 // pred_check_branch
        %231 = sbr.rel (%p228) target = $region32
      $region31: #{tpu_custom_call.1} parent=5 // pred_region
        %s232 = ssub.s32 %s16, 1
        // Predicated region
        $region33: #{tpu_custom_call.1} parent=31 // pred_check
          %p233 = pneg %p63
        $region34: #{tpu_custom_call.1} parent=31 // pred_check_branch
          %235 = sbr.rel (%p233) target = $region36
        $region35: #{tpu_custom_call.1} parent=31 // pred_region
          %236 = dma.done [#allocation4], 768
        $region36: #{tpu_custom_call.1} parent=31 // pred_fallthru
          _
        %s237 = sand.u32 %s21, 1
        %s238 = scalar_lea.sflag [#allocation7], %s237
        %s239 = sand.u32 %s78, 1
        %s240 = smul.addr %s239, 512
        %s241 = scalar_lea.vmem [#allocation6], %s240
        // Predicated region
        $region37: #{tpu_custom_call.1} parent=31 // pred_check
          %p242 = pneg %p91
        $region38: #{tpu_custom_call.1} parent=31 // pred_check_branch
          %244 = sbr.rel (%p242) target = $region40
        $region39: #{tpu_custom_call.1} parent=31 // pred_region
          %245 = dma.done %s238, 8192
        $region40: #{tpu_custom_call.1} parent=31 // pred_fallthru
          _
        %s246 = sand.u32 %s21, 1
        %s247 = scalar_lea.sflag [#allocation7], %s246
        %s248 = sand.u32 %s104, 1
        %s249 = smul.addr %s248, 2
        %s250 = scalar_lea.vmem [#allocation8], %s249
        // Predicated region
        $region41: #{tpu_custom_call.1} parent=31 // pred_check
          %p251 = pneg %p117
        $region42: #{tpu_custom_call.1} parent=31 // pred_check_branch
          %253 = sbr.rel (%p251) target = $region44
        $region43: #{tpu_custom_call.1} parent=31 // pred_region
          %254 = dma.done %s247, 32
        $region44: #{tpu_custom_call.1} parent=31 // pred_fallthru
          _
        %p255 = pneg %p63
        %p256 = pneg %p60
        %s257 = sand.u32 %s21, 1
        %s258 = scalar_lea.sflag [#allocation7], %s257
        %s259 = sand.u32 %s78, 1
        %s260 = smul.addr %s259, 512
        %s261 = scalar_lea.vmem [#allocation6], %s260
        %p262 = pneg %p91
        %p263 = pneg %p88
        %s264 = sand.u32 %s21, 1
        %s265 = scalar_lea.sflag [#allocation7], %s264
        %s266 = sand.u32 %s104, 1
        %s267 = smul.addr %s266, 2
        %s268 = scalar_lea.vmem [#allocation8], %s267
        %p269 = pneg %p117
        %p270 = pneg %p114
        %p271 = pneg %p145
        %p272 = pneg %p142
        %s273 = sand.u32 %s132, 1
        %s274 = scalar_lea.sflag [#allocation5], %s273
        %s275 = sand.u32 %s132, 1
        %s276 = smul.addr %s275, 24
        %s277 = scalar_lea.vmem [#allocation9], %s276
        %s278 = smul.u32 3, %s26
        %s279 = smul.u32 2, %s28
        %s280 = smul.u32 32, %s28
        %s281 = smul.u32 2, %s27
        %s282 = smul.u32 2, %s27
        %s283 = smul.u32 3, %s26
        %p284 = scmp.eq.s32.totalorder %s28, 0
        // Predicated region
        $region45: #{tpu_custom_call.1} parent=31 // pred_check
          %p285 = pneg %p284
        $region46: #{tpu_custom_call.1} parent=31 // pred_check_branch
          %287 = sbr.rel (%p285) target = $region48
        $region47: #{tpu_custom_call.1} parent=31 // pred_region
          %v288 = vld [vmem:[%s250] sm:$0x3]
          %v290 = vlaneseq
          %v291 = vshrl.u32 %v290, 7
          %v292 = vsub.s32 0, %v291
          %v293 = vrot.slane %v288, %v292
          %v294 = vlaneseq
          %v295 = vshrl.u32 %v294, 7
          %v296 = vsub.s32 1, %v295
          %v297 = vrot.slane %v288, %v296
          %300 = vst [vmem:[#allocation2] sm:$0xff] %v293
          %301 = vst [vmem:[#allocation2 + $0x8] sm:$0xff] %v297
          %302 = vst [vmem:[#allocation2 + $0x10] sm:$0xff] %v293
          %303 = vst [vmem:[#allocation2 + $0x18] sm:$0xff] %v297
          %304 = vst [vmem:[#allocation2 + $0x20] sm:$0xff] %v293
          %305 = vst [vmem:[#allocation2 + $0x28] sm:$0xff] %v297
        $region48: #{tpu_custom_call.1} parent=31 // pred_fallthru
          _
        %v306 = vld [vmem:[#allocation2] sm:$0xff]
        %v307 = vld [vmem:[#allocation2 + $0x8] sm:$0xff]
        %v308 = vld [vmem:[#allocation2 + $0x10] sm:$0xff]
        %v309 = vld [vmem:[#allocation2 + $0x18] sm:$0xff]
        %v310 = vld [vmem:[#allocation2 + $0x20] sm:$0xff]
        %v311 = vld [vmem:[#allocation2 + $0x28] sm:$0xff]
        %v312 = vld [vmem:[#allocation3] sm:$0xff]
        %v313 = vld [vmem:[#allocation3 + $0x8] sm:$0xff]
        %v314 = vld [vmem:[#allocation3 + $0x10] sm:$0xff]
        %v315 = vld [vmem:[#allocation3 + $0x18] sm:$0xff]
        %v316 = vld [vmem:[#allocation3 + $0x20] sm:$0xff]
        %v317 = vld [vmem:[#allocation3 + $0x28] sm:$0xff]
        %v318 = vld [vmem:[%s241] sm:$0xff]
        %v319 = vld [vmem:[%s241 + $0x8] sm:$0xff]
        %v320 = vld [vmem:[%s241 + $0x10] sm:$0xff]
        %v321 = vld [vmem:[%s241 + $0x18] sm:$0xff]
        %v322 = vld [vmem:[%s241 + $0x20] sm:$0xff]
        %v323 = vld [vmem:[%s241 + $0x28] sm:$0xff]
        %v324 = vld [vmem:[%s241 + $0x30] sm:$0xff]
        %v325 = vld [vmem:[%s241 + $0x38] sm:$0xff]
        %v326 = vld [vmem:[%s241 + $0x40] sm:$0xff]
        %v327 = vld [vmem:[%s241 + $0x48] sm:$0xff]
        %v328 = vld [vmem:[%s241 + $0x50] sm:$0xff]
        %v329 = vld [vmem:[%s241 + $0x58] sm:$0xff]
        %v330 = vld [vmem:[%s241 + $0x60] sm:$0xff]
        %v331 = vld [vmem:[%s241 + $0x68] sm:$0xff]
        %v332 = vld [vmem:[%s241 + $0x70] sm:$0xff]
        %v333 = vld [vmem:[%s241 + $0x78] sm:$0xff]
        %v334 = vld [vmem:[%s241 + $0x80] sm:$0xff]
        %v335 = vld [vmem:[%s241 + $0x88] sm:$0xff]
        %v336 = vld [vmem:[%s241 + $0x90] sm:$0xff]
        %v337 = vld [vmem:[%s241 + $0x98] sm:$0xff]
        %v338 = vld [vmem:[%s241 + $0xa0] sm:$0xff]
        %v339 = vld [vmem:[%s241 + $0xa8] sm:$0xff]
        %v340 = vld [vmem:[%s241 + $0xb0] sm:$0xff]
        %v341 = vld [vmem:[%s241 + $0xb8] sm:$0xff]
        %v342 = vld [vmem:[%s241 + $0xc0] sm:$0xff]
        %v343 = vld [vmem:[%s241 + $0xc8] sm:$0xff]
        %v344 = vld [vmem:[%s241 + $0xd0] sm:$0xff]
        %v345 = vld [vmem:[%s241 + $0xd8] sm:$0xff]
        %v346 = vld [vmem:[%s241 + $0xe0] sm:$0xff]
        %v347 = vld [vmem:[%s241 + $0xe8] sm:$0xff]
        %v348 = vld [vmem:[%s241 + $0xf0] sm:$0xff]
        %v349 = vld [vmem:[%s241 + $0xf8] sm:$0xff]
        %v350 = vld [vmem:[%s241 + $0x100] sm:$0xff]
        %v351 = vld [vmem:[%s241 + $0x108] sm:$0xff]
        %v352 = vld [vmem:[%s241 + $0x110] sm:$0xff]
        %v353 = vld [vmem:[%s241 + $0x118] sm:$0xff]
        %v354 = vld [vmem:[%s241 + $0x120] sm:$0xff]
        %v355 = vld [vmem:[%s241 + $0x128] sm:$0xff]
        %v356 = vld [vmem:[%s241 + $0x130] sm:$0xff]
        %v357 = vld [vmem:[%s241 + $0x138] sm:$0xff]
        %v358 = vld [vmem:[%s241 + $0x140] sm:$0xff]
        %v359 = vld [vmem:[%s241 + $0x148] sm:$0xff]
        %v360 = vld [vmem:[%s241 + $0x150] sm:$0xff]
        %v361 = vld [vmem:[%s241 + $0x158] sm:$0xff]
        %v362 = vld [vmem:[%s241 + $0x160] sm:$0xff]
        %v363 = vld [vmem:[%s241 + $0x168] sm:$0xff]
        %v364 = vld [vmem:[%s241 + $0x170] sm:$0xff]
        %v365 = vld [vmem:[%s241 + $0x178] sm:$0xff]
        %v366 = vld [vmem:[%s241 + $0x180] sm:$0xff]
        %v367 = vld [vmem:[%s241 + $0x188] sm:$0xff]
        %v368 = vld [vmem:[%s241 + $0x190] sm:$0xff]
        %v369 = vld [vmem:[%s241 + $0x198] sm:$0xff]
        %v370 = vld [vmem:[%s241 + $0x1a0] sm:$0xff]
        %v371 = vld [vmem:[%s241 + $0x1a8] sm:$0xff]
        %v372 = vld [vmem:[%s241 + $0x1b0] sm:$0xff]
        %v373 = vld [vmem:[%s241 + $0x1b8] sm:$0xff]
        %v374 = vld [vmem:[%s241 + $0x1c0] sm:$0xff]
        %v375 = vld [vmem:[%s241 + $0x1c8] sm:$0xff]
        %v376 = vld [vmem:[%s241 + $0x1d0] sm:$0xff]
        %v377 = vld [vmem:[%s241 + $0x1d8] sm:$0xff]
        %v378 = vld [vmem:[%s241 + $0x1e0] sm:$0xff]
        %v379 = vld [vmem:[%s241 + $0x1e8] sm:$0xff]
        %v380 = vld [vmem:[%s241 + $0x1f0] sm:$0xff]
        %v381 = vld [vmem:[%s241 + $0x1f8] sm:$0xff]
        %382 = vmatprep.subr.mxu0 %v349
        %383 = vmatpush1.msra.mxu0 %v348
        %384 = vmatprep.subr.mxu0 %v347
        %385 = vmatpush1.msra.mxu0 %v346
        %386 = vmatprep.subr.mxu0 %v345
        %387 = vmatpush1.msra.mxu0 %v344
        %388 = vmatprep.subr.mxu0 %v343
        %389 = vmatpush1.msra.mxu0 %v342
        %390 = vmatprep.subr.mxu0 %v341
        %391 = vmatpush1.msra.mxu0 %v340
        %392 = vmatprep.subr.mxu0 %v339
        %393 = vmatpush1.msra.mxu0 %v338
        %394 = vmatprep.subr.mxu0 %v337
        %395 = vmatpush1.msra.mxu0 %v336
        %396 = vmatprep.subr.mxu0 %v335
        %397 = vmatpush1.msra.mxu0 %v334
        %398 = vmatprep.subr.mxu0 %v333
        %399 = vmatpush1.msra.mxu0 %v332
        %400 = vmatprep.subr.mxu0 %v331
        %401 = vmatpush1.msra.mxu0 %v330
        %402 = vmatprep.subr.mxu0 %v329
        %403 = vmatpush1.msra.mxu0 %v328
        %404 = vmatprep.subr.mxu0 %v327
        %405 = vmatpush1.msra.mxu0 %v326
        %406 = vmatprep.subr.mxu0 %v325
        %407 = vmatpush1.msra.mxu0 %v324
        %408 = vmatprep.subr.mxu0 %v323
        %409 = vmatpush1.msra.mxu0 %v322
        %410 = vmatprep.subr.mxu0 %v321
        %411 = vmatpush1.msra.mxu0 %v320
        %412 = vmatprep.subr.mxu0 %v319
        %413 = vmatpush1.msra.mxu0 %v318
        %414 = vmatprep.subr.mxu0 %v381
        %415 = vmatpush2.msra.mxu0 %v380
        %416 = vmatprep.subr.mxu0 %v379
        %417 = vmatpush2.msra.mxu0 %v378
        %418 = vmatprep.subr.mxu0 %v377
        %419 = vmatpush2.msra.mxu0 %v376
        %420 = vmatprep.subr.mxu0 %v375
        %421 = vmatpush2.msra.mxu0 %v374
        %422 = vmatprep.subr.mxu0 %v373
        %423 = vmatpush2.msra.mxu0 %v372
        %424 = vmatprep.subr.mxu0 %v371
        %425 = vmatpush2.msra.mxu0 %v370
        %426 = vmatprep.subr.mxu0 %v369
        %427 = vmatpush2.msra.mxu0 %v368
        %428 = vmatprep.subr.mxu0 %v367
        %429 = vmatpush2.msra.mxu0 %v366
        %430 = vmatprep.subr.mxu0 %v365
        %431 = vmatpush2.msra.mxu0 %v364
        %432 = vmatprep.subr.mxu0 %v363
        %433 = vmatpush2.msra.mxu0 %v362
        %434 = vmatprep.subr.mxu0 %v361
        %435 = vmatpush2.msra.mxu0 %v360
        %436 = vmatprep.subr.mxu0 %v359
        %437 = vmatpush2.msra.mxu0 %v358
        %438 = vmatprep.subr.mxu0 %v357
        %439 = vmatpush2.msra.mxu0 %v356
        %440 = vmatprep.subr.mxu0 %v355
        %441 = vmatpush2.msra.mxu0 %v354
        %442 = vmatprep.subr.mxu0 %v353
        %443 = vmatpush2.msra.mxu0 %v352
        %444 = vmatprep.subr.mxu0 %v351
        %445 = vmatpush2.msra.mxu0 %v350
        %446 = vmatprep.mubr.f32.mxu0 %v313
        %447 = vmatmul.mubr.f32.gmra.mxu0 %v312
        %v448 = vpop.f32.mrf.mxu0
        %v449 = vadd.f32 0.0, %v448
        %v450 = vpop.f32.mrf.mxu0
        %v451 = vadd.f32 0.0, %v450
        %452 = vmatprep.mubr.f32.mxu0 %v315
        %453 = vmatmul.mubr.f32.gmra.mxu0 %v314
        %v454 = vpop.f32.mrf.mxu0
        %v455 = vadd.f32 0.0, %v454
        %v456 = vpop.f32.mrf.mxu0
        %v457 = vadd.f32 0.0, %v456
        %458 = vmatprep.mubr.f32.mxu0 %v317
        %459 = vmatmul.mubr.f32.gmra.mxu0 %v316
        %v460 = vpop.f32.mrf.mxu0
        %v461 = vadd.f32 0.0, %v460
        %v462 = vpop.f32.mrf.mxu0
        %v463 = vadd.f32 0.0, %v462
        %464 = vdwg.mxu0
        %v465 = vadd.f32 %v306, %v449
        %v466 = vadd.f32 %v307, %v451
        %v467 = vadd.f32 %v308, %v455
        %v468 = vadd.f32 %v309, %v457
        %v469 = vadd.f32 %v310, %v461
        %v470 = vadd.f32 %v311, %v463
        %471 = vst [vmem:[#allocation2] sm:$0xff] %v465
        %472 = vst [vmem:[#allocation2 + $0x8] sm:$0xff] %v466
        %473 = vst [vmem:[#allocation2 + $0x10] sm:$0xff] %v467
        %474 = vst [vmem:[#allocation2 + $0x18] sm:$0xff] %v468
        %475 = vst [vmem:[#allocation2 + $0x20] sm:$0xff] %v469
        %476 = vst [vmem:[#allocation2 + $0x28] sm:$0xff] %v470
        // Predicated region
        $region49: #{tpu_custom_call.1} parent=31 // pred_check
          %p477 = pneg %p284
        $region50: #{tpu_custom_call.1} parent=31 // pred_check_branch
          %479 = sbr.rel (%p477) target = $region52
        $region51: #{tpu_custom_call.1} parent=31 // pred_region
          %v480 = vld [vmem:[#allocation2] sm:$0xff]
          %v481 = vld [vmem:[#allocation2 + $0x8] sm:$0xff]
          %v482 = vld [vmem:[#allocation2 + $0x10] sm:$0xff]
          %v483 = vld [vmem:[#allocation2 + $0x18] sm:$0xff]
          %v484 = vld [vmem:[#allocation2 + $0x20] sm:$0xff]
          %v485 = vld [vmem:[#allocation2 + $0x28] sm:$0xff]
          %v486 = vxor.u32 %v481, 2147483648
          %v487 = vxor.u32 %v483, 2147483648
          %v488 = vxor.u32 %v485, 2147483648
          %v489 = vmul.f32 %v486, 1.442695
          %v490 = vpow.pop %v489
          %v491 = vmul.f32 %v487, 1.442695
          %v492 = vpow.pop %v491
          %v493 = vmul.f32 %v488, 1.442695
          %v494 = vpow.pop %v493
          %v495 = vadd.f32 %v490, 1.0
          %v496 = vadd.f32 %v492, 1.0
          %v497 = vadd.f32 %v494, 1.0
          %v498 = vrcp.pop %v495
          %v499 = vmul.f32 1.0, %v498
          %v500 = vrcp.pop %v496
          %v501 = vmul.f32 1.0, %v500
          %v502 = vrcp.pop %v497
          %v503 = vmul.f32 1.0, %v502
          %v504 = vmul.f32 %v480, %v499
          %v505 = vmul.f32 %v482, %v501
          %v506 = vmul.f32 %v484, %v503
          %507 = vst [vmem:[%s277] sm:$0xff] %v504
          %508 = vst [vmem:[%s277 + $0x8] sm:$0xff] %v505
          %509 = vst [vmem:[%s277 + $0x10] sm:$0xff] %v506
        $region52: #{tpu_custom_call.1} parent=31 // pred_fallthru
          _
        %s510 = sand.u32 %s132, 1
        %s511 = scalar_lea.sflag [#allocation5], %s510
        %s512 = sand.u32 %s132, 1
        %s513 = smul.addr %s512, 24
        %s514 = scalar_lea.vmem [#allocation9], %s513
        // Predicated region
        $region53: #{tpu_custom_call.1} parent=31 // pred_check
          %p515 = pneg %p142
        $region54: #{tpu_custom_call.1} parent=31 // pred_check_branch
          %517 = sbr.rel (%p515) target = $region56
        $region55: #{tpu_custom_call.1} parent=31 // pred_region
          %s518 = smul.u32 3, %s26
          %s520 = ssub.s32 384, 384
          %521 = vsyncadd %s511, %s520
          %s522 = smul.addr %s518, 2
          %s523 = sadd.s32 %s27, %s522
          %s524 = smul.addr %s523, 128
          %s525 = scalar_lea.hbm %s3, %s524
          %s526 = sshll.u32 %s514, 4
          %s527 = int_to_ptr.vmem [resolvable:$true] %s526
          %532 = dma.vmem_to_hbm [thread:$0]  %s527, 384, %s525, %s511, 128, 256, 8
        $region56: #{tpu_custom_call.1} parent=31 // pred_fallthru
          _
      $region32: #{tpu_custom_call.1} parent=5 // pred_fallthru
        _
      %p533 = scmp.le.s32.totalorder 2, %s16
      // Predicated region
      $region57: #{tpu_custom_call.1} parent=5 // pred_check
        %p534 = pneg %p533
      $region58: #{tpu_custom_call.1} parent=5 // pred_check_branch
        %536 = sbr.rel (%p534) target = $region60
      $region59: #{tpu_custom_call.1} parent=5 // pred_region
        %s537 = ssub.s32 %s16, 2
        // Predicated region
        $region61: #{tpu_custom_call.1} parent=59 // pred_check
          %p538 = pneg %p148
        $region62: #{tpu_custom_call.1} parent=59 // pred_check_branch
          %540 = sbr.rel (%p538) target = $region64
        $region63: #{tpu_custom_call.1} parent=59 // pred_region
          %s541 = sand.u32 %s133, 1
          %s542 = scalar_lea.sflag [#allocation5], %s541
          %s543 = sand.u32 %s133, 1
          %s544 = smul.addr %s543, 24
          %s545 = scalar_lea.vmem [#allocation9], %s544
          %546 = dma.done %s542, 384
        $region64: #{tpu_custom_call.1} parent=59 // pred_fallthru
          _
      $region60: #{tpu_custom_call.1} parent=5 // pred_fallthru
        _
    $region6: #{tpu_custom_call.1} parent=1 // loop_footer
      %s20 = sadd.s32 1, %s16
    $region7: #{tpu_custom_call.1} parent=1 // loop_footer_branch
      %15 = sbr.rel target = $region3
    $region8: #{tpu_custom_call.1} parent=1 // loop_exit
      _
    %547 = vsyncpa [#allocation4], 1
    %s548 = scalar_lea.sflag [#allocation4], 1
    %549 = vsyncpa %s548, 1
    %550 = vsyncpa [#allocation7], 1
    %s551 = scalar_lea.sflag [#allocation7], 1
    %552 = vsyncpa %s551, 1
    %553 = vsyncpa [#allocation5], 1
    %s554 = scalar_lea.sflag [#allocation5], 1
    %555 = vsyncpa %s554, 1

</llo_original>
